<compile_context>
chip_gen: v7x
topology: tpu7x:2x2x1
jax: 0.10.0
libtpu: 0.0.40
codegen_flags: <defaults>
</compile_context>

<pallas_src>
import jax
import jax.numpy as jnp
import numpy as np
from jax.experimental import pallas as pl
from jax.experimental.pallas import tpu as pltpu

# VMEM budgets (bytes).  Tiles are derived from these so the kernels stay inside the
# smallest physical VMEM across generations (v7x: 64 MiB / core) with headroom.
_VMEM_TILE_BUDGET = 30 * 2**20
_VMEM_LIMIT_CAP = 48 * 2**20


def _round_up(n, m):
    return ((n + m - 1) // m) * m


def _largest_divisor_leq(n, cap):
    cap = max(1, min(n, cap))
    for c in range(cap, 0, -1):
        if n % c == 0:
            return c
    return 1


def _vmem_limit(bytes_needed):
    # Always >= the 32 MiB scoped default (harmless floor), capped below v7x physical.
    return int(min(max(bytes_needed * 5 // 4 + (2 << 20), 32 * 2**20), _VMEM_LIMIT_CAP))


# ----------------------- tiled matmul + bias (XW and FC) -----------------------
def _matmul_bias_kernel(x_ref, w_ref, b_ref, o_ref):
    # bf16 x bf16 on the MXU, f32 accumulation, bias folded in once.
    o_ref[...] = (jnp.dot(x_ref[...], w_ref[...],
                          preferred_element_type=jnp.float32)
                  + b_ref[...]).astype(o_ref.dtype)


def _pick_matmul_tiles(N, K, V, out_bytes):
    """Pick (tm, tv).  Prefer tv == V so the (K, tv) weight block is grid-invariant
    (fetched once, single-buffered); tm is then the largest row tile in budget."""
    tm_cands = (512, 256, 128, 64, 32, 16, 8)
    tv_cands = [V] + [c for c in (2048, 1024, 512, 256, 128) if c < V and V % c == 0]
    for tv in tv_cands:
        vg = V // tv
        wbuf = 1 if vg == 1 else 2                        # single-buffer invariant W
        fixed = K * tv * 2 * wbuf + 8 * tv * 4 * wbuf     # W (bf16) + bias (f32, sublane pad)
        if fixed > _VMEM_TILE_BUDGET:
            continue
        per_row = K * 2 * 2 + tv * out_bytes * 2          # x + out blocks, double-buffered
        max_tm = (_VMEM_TILE_BUDGET - fixed) // per_row
        if max_tm < 8:
            continue
        tm = None
        for c in tm_cands:                                # prefer a divisor of N (no padding)
            if c <= max_tm and N % c == 0:
                tm = c
                break
        if tm is None:
            tm = next((c for c in tm_cands if c <= max_tm), 8)
        return tm, tv
    # TODO(synk): very large K would need a third (reduction) grid axis + acc scratch.
    return 8, V


def matmul_bias_pallas(x2d, w_t, b_row, out_dtype=jnp.bfloat16):
    """out[n, v] = sum_k x2d[n, k] * w_t[k, v] + b_row[0, v]   (f32 accumulate).

    x2d / w_t are bf16 (MXU-native), bias is f32, output dtype selectable
    (bf16 for inter-layer activations, f32 for the final logits)."""
    N, K = x2d.shape
    Kw, V = w_t.shape
    assert K == Kw and b_row.shape == (1, V)
    out_bytes = jnp.dtype(out_dtype).itemsize
    tm, tv = _pick_matmul_tiles(N, K, V, out_bytes)
    Np = _round_up(N, tm)
    if Np != N:                                   # pad M instead of a whole-axis block
        x2d = jnp.pad(x2d, ((0, Np - N), (0, 0)))
    vg, ng = V // tv, Np // tm
    wbuf = 1 if vg == 1 else 2
    vmem_bytes = (tm * K * 2 * 2 + K * tv * 2 * wbuf + 8 * tv * 4 * wbuf
                  + tm * tv * out_bytes * 2)
    if vg == 1:
        # Grid-invariant weight/bias: one resident VMEM buffer each.
        w_spec = pl.BlockSpec((K, tv), lambda j, i: (0, j), pipeline_mode=pl.Buffered(1))
        b_spec = pl.BlockSpec((1, tv), lambda j, i: (0, j), pipeline_mode=pl.Buffered(1))
    else:
        w_spec = pl.BlockSpec((K, tv), lambda j, i: (0, j))
        b_spec = pl.BlockSpec((1, tv), lambda j, i: (0, j))
    # Grid order: the W-varying (column) axis is OUTER so each W block is DMA'd
    # exactly once; activation rows stream through the inner axis.
    out = pl.pallas_call(
        _matmul_bias_kernel,
        out_shape=jax.ShapeDtypeStruct((Np, V), out_dtype),
        grid_spec=pltpu.PrefetchScalarGridSpec(
            num_scalar_prefetch=0,
            grid=(vg, ng),
            in_specs=[
                pl.BlockSpec((tm, K), lambda j, i: (i, 0)),
                w_spec,
                b_spec,
            ],
            out_specs=pl.BlockSpec((tm, tv), lambda j, i: (i, j)),
        ),
        compiler_params=pltpu.CompilerParams(
            dimension_semantics=("parallel", "parallel"),   # megacore-friendly
            vmem_limit_bytes=_vmem_limit(vmem_bytes)),
    )(x2d, w_t, b_row)
    return out if Np == N else out[:N]


# ------------------------------ LSTM recurrence -------------------------------
def _lstm_recurrence_kernel(xw_ref, whh_ref, h0_ref, c0_ref,
                            y_ref, hn_ref, cn_ref, h_sc, c_sc):
    t_chunk = pl.program_id(1)
    Tc = xw_ref.shape[0]
    H = h_sc.shape[-1]

    @pl.when(t_chunk == 0)                        # (re)load carried state per batch block
    def _():
        h_sc[...] = h0_ref[...]
        c_sc[...] = c0_ref[...]

    whh = whh_ref[...]                            # bf16 W_hh^T: one load per chunk

    def step(s, carry):
        h, c = carry                              # f32 carried state
        # Input projection + bias were hoisted; only h @ W_hh^T remains (bf16 MXU, f32 acc).
        gates = (xw_ref[s].astype(jnp.float32)
                 + jnp.dot(h.astype(jnp.bfloat16), whh,
                           preferred_element_type=jnp.float32))
        # Gate columns are pre-permuted to i|f|o|g: three sigmoids fuse into one
        # contiguous lane slice, tanh takes the remaining slice.
        sig = jax.nn.sigmoid(gates[:, :3 * H])
        i, f, o = sig[:, :H], sig[:, H:2 * H], sig[:, 2 * H:3 * H]
        g = jnp.tanh(gates[:, 3 * H:])
        c = f * c + i * g
        h = o * jnp.tanh(c)
        y_ref[s] = h.astype(y_ref.dtype)
        return h, c

    # Bounded unroll: scheduling visibility without vreg spills on real shapes.
    h, c = jax.lax.fori_loop(0, Tc, step, (h_sc[...], c_sc[...]),
                             unroll=min(4, Tc))
    h_sc[...] = h
    c_sc[...] = c

    @pl.when(t_chunk == pl.num_programs(1) - 1)
    def _():
        hn_ref[...] = h.astype(hn_ref.dtype)
        cn_ref[...] = c.astype(cn_ref.dtype)


def _pick_recurrence_tiles(T, B, H):
    # Split the batch across the "parallel" grid axis (2 TensorCores on v7x) only
    # when the halves stay (8,*)-aligned and MXU-friendly; otherwise keep all of B.
    Bb = B // 2 if (B % 2 == 0 and (B // 2) % 8 == 0 and B // 2 >= 64) else B
    fixed = (H * (4 * H) * 2              # W_hh^T (bf16, single-buffered)
             + 2 * (2 * Bb * H * 4)       # h0, c0 blocks (f32, double-buffered)
             + 2 * (2 * Bb * H * 4)       # h_n, c_n output blocks (f32, double-buffered)
             + 2 * (Bb * H * 4))          # h/c VMEM scratch
    per_t = Bb * (4 * H) * 2 * 2 + Bb * H * 2 * 2   # xw + y blocks (bf16, double-buffered)
    max_tc = max(1, (_VMEM_TILE_BUDGET - fixed) // per_t)
    Tc = _largest_divisor_leq(T, min(int(max_tc), 64, T))
    return Bb, Tc, fixed + per_t * Tc


def lstm_recurrence_pallas(xw_tbg, w_hh_t, h0, c0):
    """Sequential LSTM recurrence over precomputed gate pre-activations.

    xw_tbg: (T, B, 4H) bf16 = X @ W_ih^T + (b_ih + b_hh), gate order i|f|o|g.
    w_hh_t: (H, 4H) bf16.  h0/c0: (B, H) f32.
    Returns y (T, B, H) bf16 and h_n/c_n (B, H) f32."""
    T, B, G = xw_tbg.shape
    H = h0.shape[-1]
    assert G == 4 * H
    Bb, Tc, vmem_bytes = _pick_recurrence_tiles(T, B, H)
    return pl.pallas_call(
        _lstm_recurrence_kernel,
        out_shape=(jax.ShapeDtypeStruct((T, B, H), jnp.bfloat16),
                   jax.ShapeDtypeStruct((B, H), jnp.float32),
                   jax.ShapeDtypeStruct((B, H), jnp.float32)),
        grid_spec=pltpu.PrefetchScalarGridSpec(
            num_scalar_prefetch=0,
            grid=(B // Bb, T // Tc),
            in_specs=[
                pl.BlockSpec((Tc, Bb, G), lambda b, t: (t, b, 0)),       # hoisted gates
                pl.BlockSpec((H, G), lambda b, t: (0, 0),
                             pipeline_mode=pl.Buffered(1)),              # W_hh^T (invariant)
                pl.BlockSpec((Bb, H), lambda b, t: (b, 0)),              # h0
                pl.BlockSpec((Bb, H), lambda b, t: (b, 0)),              # c0
            ],
            out_specs=[
                pl.BlockSpec((Tc, Bb, H), lambda b, t: (t, b, 0)),       # y chunk
                pl.BlockSpec((Bb, H), lambda b, t: (b, 0)),              # h_n
                pl.BlockSpec((Bb, H), lambda b, t: (b, 0)),              # c_n
            ],
            scratch_shapes=[pltpu.VMEM((Bb, H), jnp.float32),
                            pltpu.VMEM((Bb, H), jnp.float32)],
        ),
        compiler_params=pltpu.CompilerParams(
            dimension_semantics=("parallel", "arbitrary"),   # batch-parallel, time-serial
            vmem_limit_bytes=_vmem_limit(vmem_bytes)),
    )(xw_tbg, w_hh_t, h0, c0)


# --------------------------------- Forward -------------------------------------
def char_lstm_forward(params, x_ids, hidden):
    h0_all, c0_all = hidden
    B, T = x_ids.shape
    H = params["embedding"].shape[-1]
    V = params["vocab_size"]

    # Embedding gather straight into time-major (T, B, H), cast to bf16 MXU operands.
    # TODO(synk): fuse this gather into the layer-0 XW kernel via scalar-prefetched
    # token ids + a pl.Element row index_map to drop one HBM round trip.
    x_tm = params["embedding"][x_ids.T].astype(jnp.bfloat16)

    h_n, c_n = [], []
    for l, lw in enumerate(params["lstm"]):
        # Hoisted input projection: one (T*B, H_in) x (H_in, 4H) bf16 matmul + fused bias.
        xw = matmul_bias_pallas(x_tm.reshape(T * B, -1), lw["w_ih_t"], lw["bias"],
                                out_dtype=jnp.bfloat16)
        x_tm, hn, cn = lstm_recurrence_pallas(xw.reshape(T, B, 4 * H), lw["w_hh_t"],
                                              h0_all[l], c0_all[l])
        h_n.append(hn)
        c_n.append(cn)

    # Match torch batch_first reshape: rows ordered (b, t).
    # TODO(synk): fold this transpose into the last layer's y out_spec to save one
    # HBM round trip over the final-layer activations.
    out_bm = jnp.transpose(x_tm, (1, 0, 2)).reshape(B * T, H)
    logits_p = matmul_bias_pallas(out_bm, params["fc_w_t_pad"], params["fc_b_pad"],
                                  out_dtype=jnp.float32)
    logits = logits_p[:, :V]                               # drop lane padding
    return logits, (jnp.stack(h_n), jnp.stack(c_n))


# ------------------------------ Param init / ref --------------------------------
def init_params(key, vocab_size, hidden_dim, layer_dim):
    H = hidden_dim
    k = 1.0 / np.sqrt(H)
    keys = jax.random.split(key, 2 + layer_dim)
    # Gate permutation: PyTorch i|f|g|o -> i|f|o|g (three contiguous sigmoid gates).
    perm = np.concatenate([np.arange(0, 2 * H), np.arange(3 * H, 4 * H),
                           np.arange(2 * H, 3 * H)])
    params = {"embedding": jax.random.normal(keys[0], (vocab_size, H), jnp.float32),
              "vocab_size": vocab_size}
    lstm, lstm_ref = [], []
    for l in range(layer_dim):
        kw = jax.random.split(keys[2 + l], 4)
        w_ih = jax.random.uniform(kw[0], (4 * H, H), jnp.float32, -k, k)
        w_hh = jax.random.uniform(kw[1], (4 * H, H), jnp.float32, -k, k)
        b_ih = jax.random.uniform(kw[2], (4 * H,), jnp.float32, -k, k)
        b_hh = jax.random.uniform(kw[3], (4 * H,), jnp.float32, -k, k)
        bias = b_ih + b_hh                                # folded once into hoisted XW
        # Kernel weights: pre-transposed (H_in, 4H), gate columns permuted, bf16 MXU operands.
        lstm.append({"w_ih_t": w_ih.T[:, perm].astype(jnp.bfloat16),
                     "w_hh_t": w_hh.T[:, perm].astype(jnp.bfloat16),
                     "bias": bias[perm].reshape(1, 4 * H)})       # f32
        # f32 weights in original PyTorch gate order: used only by the pure-JAX reference.
        lstm_ref.append({"w_ih_t": w_ih.T, "w_hh_t": w_hh.T,
                         "bias": bias.reshape(1, 4 * H)})
    params["lstm"], params["lstm_ref"] = lstm, lstm_ref
    kf = jax.random.split(keys[1], 2)
    fc_w = jax.random.uniform(kf[0], (vocab_size, H), jnp.float32, -k, k)
    fc_b = jax.random.uniform(kf[1], (vocab_size,), jnp.float32, -k, k)
    params["fc_w_t"] = fc_w.T                  # (H, V) f32: pure-JAX reference
    params["fc_b"] = fc_b
    # Zero-pad the vocab axis to a lane multiple so FC output stores are unmasked vst.
    Vp = _round_up(vocab_size, 128)
    params["fc_w_t_pad"] = jnp.pad(fc_w.T, ((0, 0), (0, Vp - vocab_size))).astype(jnp.bfloat16)
    params["fc_b_pad"] = jnp.pad(fc_b, (0, Vp - vocab_size)).reshape(1, Vp)
    return params


def reference_forward(params, x_ids, hidden):
    """Pure-JAX f32 reference with identical semantics (for correctness check)."""
    h0_all, c0_all = hidden
    emb = params["embedding"][x_ids]
    B, T, H = emb.shape
    x = jnp.transpose(emb, (1, 0, 2))
    h_n, c_n = [], []
    for l, lw in enumerate(params["lstm_ref"]):
        h, c = h0_all[l], c0_all[l]
        ys = []
        for t in range(T):
            gates = x[t] @ lw["w_ih_t"] + h @ lw["w_hh_t"] + lw["bias"]
            i = jax.nn.sigmoid(gates[:, 0:H])
            f = jax.nn.sigmoid(gates[:, H:2 * H])
            g = jnp.tanh(gates[:, 2 * H:3 * H])
            o = jax.nn.sigmoid(gates[:, 3 * H:4 * H])
            c = f * c + i * g
            h = o * jnp.tanh(c)
            ys.append(h)
        x = jnp.stack(ys)
        h_n.append(h)
        c_n.append(c)
    out = jnp.transpose(x, (1, 0, 2)).reshape(B * T, H)
    logits = out @ params["fc_w_t"] + params["fc_b"]
    return logits, (jnp.stack(h_n), jnp.stack(c_n))


if __name__ == "__main__":
    vocab_size, hidden_dim, layer_dim = 64, 32, 2
    batch, seq = 2, 8

    key = jax.random.PRNGKey(0)
    k_params, k_x, k_h, k_c = jax.random.split(key, 4)

    params = init_params(k_params, vocab_size, hidden_dim, layer_dim)
    x_ids = jax.random.randint(k_x, (batch, seq), 0, vocab_size, dtype=jnp.int32)
    h0 = jax.random.normal(k_h, (layer_dim, batch, hidden_dim), jnp.float32)
    c0 = jax.random.normal(k_c, (layer_dim, batch, hidden_dim), jnp.float32)

    logits, (h_n, c_n) = char_lstm_forward(params, x_ids, (h0, c0))
    jax.block_until_ready((logits, h_n, c_n))

    ref_logits, (ref_h, ref_c) = reference_forward(params, x_ids, (h0, c0))
    # bf16 MXU operands / bf16 inter-layer activations vs f32 reference -> loosened tol.
    np.testing.assert_allclose(np.asarray(logits), np.asarray(ref_logits),
                               rtol=5e-2, atol=5e-2)
    np.testing.assert_allclose(np.asarray(h_n), np.asarray(ref_h),
                               rtol=5e-2, atol=5e-2)
    np.testing.assert_allclose(np.asarray(c_n), np.asarray(ref_c),
                               rtol=5e-2, atol=5e-2)

    assert logits.shape == (batch * seq, vocab_size)
    assert h_n.shape == (layer_dim, batch, hidden_dim)
    assert c_n.shape == (layer_dim, batch, hidden_dim)
    print("KERNEL_OK")
</pallas_src>

<mosaic_0001>
module attributes {stable_mosaic.version = 11 : i64} {
  func.func @_matmul_bias_kernel(%arg0: i32, %arg1: i32, %arg2: memref<16x32xbf16, #tpu.memory_space<vmem>>, %arg3: memref<32x128xbf16, #tpu.memory_space<vmem>>, %arg4: memref<1x128xf32, #tpu.memory_space<vmem>>, %arg5: memref<16x128xbf16, #tpu.memory_space<vmem>>) attributes {dimension_semantics = [#tpu.dimension_semantics<parallel>, #tpu.dimension_semantics<parallel>], iteration_bounds = array<i64: 1, 1>, scalar_prefetch = 0 : i64, scratch_operands = 0 : i64, tpu.core_type = #tpu.core_type<tc>, window_params = [{transform_indices = @transform_0, window_bounds = array<i64: 16, 32>}, {pipeline_mode = #tpu.pipeline_mode<synchronous>, transform_indices = @transform_1, window_bounds = array<i64: 32, 128>}, {pipeline_mode = #tpu.pipeline_mode<synchronous>, transform_indices = @transform_2, window_bounds = array<i64: 1, 128>}, {transform_indices = @transform_3, window_bounds = array<i64: 16, 128>}]} {
    %c0 = arith.constant 0 : index
    %c0_0 = arith.constant 0 : index
    %0 = vector.load %arg2[%c0, %c0_0] : memref<16x32xbf16, #tpu.memory_space<vmem>>, vector<16x32xbf16>
    %c0_1 = arith.constant 0 : index
    %c0_2 = arith.constant 0 : index
    %1 = vector.load %arg3[%c0_1, %c0_2] : memref<32x128xbf16, #tpu.memory_space<vmem>>, vector<32x128xbf16>
    %cst = arith.constant dense<0.000000e+00> : vector<16x128xf32>
    %2 = tpu.matmul %0, %1, %cst {dimension_numbers = #tpu.dot_dimension_numbers<[1], [0], [0], [1], [0, 0, 1, 1], [], []>} : vector<16x32xbf16>, vector<32x128xbf16>, vector<16x128xf32> -> vector<16x128xf32>
    %c0_3 = arith.constant 0 : index
    %c0_4 = arith.constant 0 : index
    %3 = vector.load %arg4[%c0_3, %c0_4] : memref<1x128xf32, #tpu.memory_space<vmem>>, vector<1x128xf32>
    %4 = vector.broadcast %3 : vector<1x128xf32> to vector<16x128xf32>
    %5 = arith.addf %2, %4 : vector<16x128xf32>
    %6 = arith.truncf %5 : vector<16x128xf32> to vector<16x128xbf16>
    %c0_5 = arith.constant 0 : index
    %c0_6 = arith.constant 0 : index
    %7 = vector.load %arg5[%c0_5, %c0_6] : memref<16x128xbf16, #tpu.memory_space<vmem>>, vector<16x128xbf16>
    tpu.vector_store %arg5[%c0_5, %c0_6], %6 {strides = array<i32>} : memref<16x128xbf16, #tpu.memory_space<vmem>>, vector<16x128xbf16>,
    return
  }
  func.func @transform_0(%arg0: i32, %arg1: i32) -> (i32, i32) {
    %c0_i32 = arith.constant 0 : i32
    %c0_i32_0 = arith.constant 0 : i32
    return %arg1, %c0_i32 : i32, i32
  }
  func.func @transform_1(%arg0: i32, %arg1: i32) -> (i32, i32) {
    %c0_i32 = arith.constant 0 : i32
    %c0_i32_0 = arith.constant 0 : i32
    return %c0_i32, %arg0 : i32, i32
  }
  func.func @transform_2(%arg0: i32, %arg1: i32) -> (i32, i32) {
    %c0_i32 = arith.constant 0 : i32
    %c0_i32_0 = arith.constant 0 : i32
    return %c0_i32, %arg0 : i32, i32
  }
  func.func @transform_3(%arg0: i32, %arg1: i32) -> (i32, i32) {
    %c0_i32 = arith.constant 0 : i32
    return %arg1, %arg0 : i32, i32
  }
}

</mosaic_0001>

<llo_original>
// kernel: tpu_custom_call.1
$region0: #{tpu_custom_call.1}
  #allocation0 [shape = 'u32[]', space=smem, size = 0x4, offset = 0x4, fixed_abs, tag = 'smem constant byte address 0x4 - core index']
  #allocation1 [shape = 'u32[144,128]{1,0:T(1,128)}', space=vmem, size = 0x12000, scoped, tag = 'internal scratch']
  %s0 = inlined_call_operand.hbm [shape: bf16[16,32], index: 0, kind: input, shape index: {}]
  %s1 = inlined_call_operand.hbm [shape: bf16[32,128], index: 1, kind: input, shape index: {}]
  %s2 = inlined_call_operand.vmem [shape: f32[1,128], index: 2, kind: input, shape index: {}]
  %s3 = inlined_call_operand.hbm [shape: bf16[16,128], index: 3, kind: output, shape index: {}]
  %s4 = sld [smem:[#allocation0]]
  $region30: #{tpu_custom_call.1} parent=0
    _
  %s6 = ssub.s32 1, %s4
  %s7 = scalar_select 0, %s6, %s4
  $region1: #{tpu_custom_call.1} parent=0
    #allocation2 [shape = 'u8[4096]{0}', space=vmem, size = 0x1000, scoped, tag = 'input window, operand 0, single buffered']
    #allocation3 [shape = 's32[1]{0}', space=sflag, size = 0x4, scoped, tag = 'scoped memory for tpu_custom_call.1']
    #allocation4 [shape = 's32[1]{0}', space=sflag, size = 0x4, scoped, tag = 'scoped memory for tpu_custom_call.1']
    #allocation5 [shape = 'u8[8192]{0}', space=vmem, size = 0x2000, scoped, tag = 'input window, operand 1, single buffered']
    #allocation6 [shape = 's32[1]{0}', space=sflag, size = 0x4, scoped, tag = 'scoped memory for tpu_custom_call.1']
    #allocation7 [shape = 'u8[4096]{0}', space=vmem, size = 0x1000, scoped, tag = 'output window, operand 0, single buffered']
    %8 = vsyncpa [#allocation3], 0
    %9 = vsyncpa [#allocation6], 0
    %10 = vsyncpa [#allocation4], 0
    // Predicated region
    $region2: #{tpu_custom_call.1} parent=1 // pred_check
      _
    $region3: #{tpu_custom_call.1} parent=1 // pred_check_branch
      %12 = sbr.rel (0) target = $region5
    $region4: #{tpu_custom_call.1} parent=1 // pred_region
      %s14 = ssub.s32 128, 128
      %15 = vsyncadd [#allocation3], %s14
      %s16 = sshll.u32 [#allocation2], 4
      %s17 = int_to_ptr.vmem [resolvable:$true] %s16
      %22 = dma.hbm_to_vmem [thread:$0]  %s0, 128, %s17, [#allocation3], 64, 64, 4
    $region5: #{tpu_custom_call.1} parent=1 // pred_fallthru
      _
    // Predicated region
    $region6: #{tpu_custom_call.1} parent=1 // pred_check
      _
    $region7: #{tpu_custom_call.1} parent=1 // pred_check_branch
      %24 = sbr.rel (0) target = $region9
    $region8: #{tpu_custom_call.1} parent=1 // pred_region
      %s26 = ssub.s32 256, 256
      %27 = vsyncadd [#allocation6], %s26
      %s28 = sshll.u32 [#allocation5], 4
      %s29 = int_to_ptr.vmem [resolvable:$true] %s28
      %34 = dma.hbm_to_vmem [thread:$0]  %s1, 256, %s29, [#allocation6], 64, 64, 4
    $region9: #{tpu_custom_call.1} parent=1 // pred_fallthru
      _
    // Predicated region
    $region10: #{tpu_custom_call.1} parent=1 // pred_check
      _
    $region11: #{tpu_custom_call.1} parent=1 // pred_check_branch
      %36 = sbr.rel (0) target = $region13
    $region12: #{tpu_custom_call.1} parent=1 // pred_region
      _
    $region13: #{tpu_custom_call.1} parent=1 // pred_fallthru
      _
    // Predicated region
    $region14: #{tpu_custom_call.1} parent=1 // pred_check
      _
    $region15: #{tpu_custom_call.1} parent=1 // pred_check_branch
      %38 = sbr.rel (0) target = $region17
    $region16: #{tpu_custom_call.1} parent=1 // pred_region
      %39 = dma.done [#allocation3], 128
    $region17: #{tpu_custom_call.1} parent=1 // pred_fallthru
      _
    // Predicated region
    $region18: #{tpu_custom_call.1} parent=1 // pred_check
      _
    $region19: #{tpu_custom_call.1} parent=1 // pred_check_branch
      %41 = sbr.rel (0) target = $region21
    $region20: #{tpu_custom_call.1} parent=1 // pred_region
      %42 = dma.done [#allocation6], 256
    $region21: #{tpu_custom_call.1} parent=1 // pred_fallthru
      _
    %v44 = vld [vmem:[#allocation2] sm:$0xf]
    %v45 = vld [vmem:[#allocation2 + $0x4] sm:$0xf]
    %v46 = vld [vmem:[#allocation5] sm:$0xf]
    %v47 = vld [vmem:[#allocation5 + $0x4] sm:$0xf]
    %v48 = vld [vmem:[#allocation5 + $0x8] sm:$0xf]
    %v49 = vld [vmem:[#allocation5 + $0xc] sm:$0xf]
    %v50 = vld [vmem:[%s2] sm:$0x1]
    %v52 = vlaneseq
    %v53 = vshrl.u32 %v52, 7
    %v54 = vsub.s32 0, %v53
    %v55 = vrot.slane %v50, %v54
    %v59 = vunpack.c.l.b16 %v44
    %v60 = vunpack.c.l.b16 %v45
    %v61 = vpack.c.b16 %v60, %v59
    %v66 = vunpack.c.l.b16 %v46
    %v67 = vunpack.c.l.b16 %v47
    %v68 = vunpack.c.l.b16 %v48
    %v69 = vunpack.c.l.b16 %v49
    %v70 = vpack.c.b16 %v67, %v66
    %v71 = vpack.c.b16 %v69, %v68
    %vm74 = vcmask 261120
    %v76 = vsel %vm74, %v61, 0
    %78 = vmatprep.subr.bf16.mxu0 0
    %79 = vmatpush1.bf16.msra.mxu0 %v70
    %80 = vmatprep.subr.bf16.mxu0 0
    %81 = vmatpush1.bf16.msra.mxu0 %v71
    %82 = vmatprep.subr.bf16.mxu0 0
    %83 = vmatpush1.bf16.msra.mxu0 0
    %84 = vmatprep.subr.bf16.mxu0 0
    %85 = vmatpush1.bf16.msra.mxu0 0
    %86 = vmatprep.subr.bf16.mxu0 0
    %87 = vmatpush1.bf16.msra.mxu0 0
    %88 = vmatprep.subr.bf16.mxu0 0
    %89 = vmatpush1.bf16.msra.mxu0 0
    %90 = vmatprep.subr.bf16.mxu0 0
    %91 = vmatpush1.bf16.msra.mxu0 0
    %92 = vmatprep.subr.bf16.mxu0 0
    %93 = vmatpush1.bf16.msra.mxu0 0
    %94 = vmatprep.subr.bf16.mxu0 0
    %95 = vmatpush1.bf16.msra.mxu0 0
    %96 = vmatprep.subr.bf16.mxu0 0
    %97 = vmatpush1.bf16.msra.mxu0 0
    %98 = vmatprep.subr.bf16.mxu0 0
    %99 = vmatpush1.bf16.msra.mxu0 0
    %100 = vmatprep.subr.bf16.mxu0 0
    %101 = vmatpush1.bf16.msra.mxu0 0
    %102 = vmatprep.subr.bf16.mxu0 0
    %103 = vmatpush1.bf16.msra.mxu0 0
    %104 = vmatprep.subr.bf16.mxu0 0
    %105 = vmatpush1.bf16.msra.mxu0 0
    %106 = vmatprep.subr.bf16.mxu0 0
    %107 = vmatpush1.bf16.msra.mxu0 0
    %108 = vmatprep.subr.bf16.mxu0 0
    %109 = vmatpush1.bf16.msra.mxu0 0
    %110 = vmatprep.mubr.bf16.mxu0 0
    %111 = vmatmul.mubr.bf16.gmra.mrb[0].mxu0 %v76
    %v112 = vpop.f32.mrb[0].mxu0
    %v113 = vadd.f32 %v55, %v112
    %v114 = vpop.f32.mrb[0].mxu0
    %v115 = vpop.f32.mrb[0].mxu0
    %v116 = vadd.f32 %v55, %v115
    %v117 = vpop.f32.mrb[0].mxu0
    %118 = vdwg.mxu0
    %v119 = vpack.c.bf16 %v116, %v113
    %v121 = vunpack.c.l.b16 %v119
    %v122 = vunpack.c.h.b16 %v119
    %v123 = vpack.c.b16 %v121, %v121
    %v124 = vpack.c.b16 %v122, %v122
    %127 = vst [vmem:[#allocation7] sm:$0xf] %v123
    %128 = vst [vmem:[#allocation7 + $0x4] sm:$0xf] %v124
    // Predicated region
    $region22: #{tpu_custom_call.1} parent=1 // pred_check
      _
    $region23: #{tpu_custom_call.1} parent=1 // pred_check_branch
      %130 = sbr.rel (0) target = $region25
    $region24: #{tpu_custom_call.1} parent=1 // pred_region
      %s132 = ssub.s32 128, 128
      %133 = vsyncadd [#allocation4], %s132
      %s134 = sshll.u32 [#allocation7], 4
      %s135 = int_to_ptr.vmem [resolvable:$true] %s134
      %140 = dma.vmem_to_hbm [thread:$0]  %s135, 128, %s3, [#allocation4], 64, 64, 4
    $region25: #{tpu_custom_call.1} parent=1 // pred_fallthru
      _
    // Predicated region
    $region26: #{tpu_custom_call.1} parent=1 // pred_check
      _
    $region27: #{tpu_custom_call.1} parent=1 // pred_check_branch
      %142 = sbr.rel (0) target = $region29
    $region28: #{tpu_custom_call.1} parent=1 // pred_region
      %143 = dma.done [#allocation4], 128
    $region29: #{tpu_custom_call.1} parent=1 // pred_fallthru
      _
    %144 = vsyncpa [#allocation3], 1
    %145 = vsyncpa [#allocation6], 1
    %146 = vsyncpa [#allocation4], 1

</llo_original>
